<compile_context>
chip_gen: v6e
topology: v6e:2x2x1
jax: 0.10.0
libtpu: 0.0.40
codegen_flags: <defaults>
</compile_context>

<pallas_src>
import functools

import jax
import jax.numpy as jnp
from jax import lax
from jax.experimental import pallas as pl
from jax.experimental.pallas import tpu as pltpu

NUM_DOMAINS = 4
STRIDE = 16          # hard-coded in the PyTorch module (stride * 4 == N)
EPS = 1e-9           # module default eps

_T1_TARGET_BLOCK_BYTES = 2 * 1024 * 1024   # x-block size aimed for (pipeline sweet spot)
_T1_MAX_BLOCK_BYTES = 4 * 1024 * 1024      # beyond this, tile HW (two-pass path)


# ---------------------------------------------------------------------------
# Tile selection helpers
# ---------------------------------------------------------------------------

def _vmem_capacity_bytes():
    """Physical VMEM per TensorCore; conservative fallback if query fails."""
    try:
        info = pltpu.get_tpu_info()
        cap = int(getattr(info, "vmem_capacity_bytes", 0))
        if cap > 0:
            return cap
    except Exception:
        pass
    return 64 * 1024 * 1024   # v7x per-TC VMEM (smallest of the targets)


def _sublane_pack(itemsize):
    """Channel-tile granularity so sub-32-bit dtypes fill their vreg sublanes."""
    return {4: 8, 2: 16, 1: 32}.get(int(itemsize), 8)


def _c_tile_candidates(C, pack):
    """Channel tiles that divide C and are pack-multiples, plus full C."""
    cands = {C}
    if C % pack == 0:
        t = pack
        while t < C:
            if C % t == 0:
                cands.add(t)
            t += pack
    return sorted(cands, reverse=True)   # largest first


def _select_t1_c_tile(C, HW, itemsize):
    """Largest channel tile whose (STRIDE, c_tile, HW) x-block is ~<=2 MiB."""
    cands = _c_tile_candidates(C, _sublane_pack(itemsize))
    for ct in cands:
        if STRIDE * ct * HW * itemsize <= _T1_TARGET_BLOCK_BYTES:
            return ct
    ct = cands[-1]
    if STRIDE * ct * HW * itemsize <= _T1_MAX_BLOCK_BYTES:
        return ct
    return None            # even the smallest full-HW block is too big -> T2


def _select_t2_tiles(C, HW, itemsize):
    """Smallest legal channel tile + largest 128-multiple HW tile <= ~2 MiB."""
    ct = _c_tile_candidates(C, _sublane_pack(itemsize))[-1]
    HWp = ((HW + 127) // 128) * 128      # pad target (lane-dense, legal tiling)
    m = HWp // 128
    ht = 128
    for k in range(1, m + 1):
        if m % k == 0 and STRIDE * ct * (128 * k) * itemsize <= _T1_TARGET_BLOCK_BYTES:
            ht = 128 * k
    return ct, ht, HWp


# ---------------------------------------------------------------------------
# Kernels
# ---------------------------------------------------------------------------

def _bn_block_kernel(x_ref, gamma_ref, beta_ref, o_ref, *, lp_apply):
    """T1: one (STRIDE, c_tile, HW) block = one domain x one channel tile.

    Stats (f32, two-pass) and apply in a single HBM sweep of the block.
    """
    x = x_ref[...]                                   # native dtype
    xf = x.astype(jnp.float32)
    inv_cnt = 1.0 / float(x.shape[0] * x.shape[2])
    mean = jnp.sum(xf, axis=(0, 2), keepdims=True) * inv_cnt          # (1,Ct,1)
    var = jnp.sum(jnp.square(xf - mean), axis=(0, 2), keepdims=True) * inv_cnt
    inv = lax.rsqrt(var + EPS)
    scale = gamma_ref[...] * inv                                      # f32 (1,Ct,1)
    shift = beta_ref[...] - mean * scale
    if lp_apply:
        # bf16/f16: apply sweep in the input dtype — no full-block f32 temp
        # on the output path, half the VALU work on v6e/v7x.
        o_ref[...] = (x * scale.astype(x.dtype)
                      + shift.astype(x.dtype)).astype(o_ref.dtype)
    else:
        o_ref[...] = (xf * scale + shift).astype(o_ref.dtype)


def _stats_kernel(x_ref, sum_ref, sq_ref):
    """T2 pass 1: accumulate per-channel sum / sum-of-squares over HW tiles.

    Outputs are resident accumulators across the (last, "arbitrary") hw axis.
    Zero padding of HW contributes 0 to both sums, so it is harmless.
    """
    @pl.when(pl.program_id(2) == 0)
    def _():
        sum_ref[...] = jnp.zeros_like(sum_ref)
        sq_ref[...] = jnp.zeros_like(sq_ref)

    xf = x_ref[...].astype(jnp.float32)              # (STRIDE, c_tile, hw_tile)
    sum_ref[...] += jnp.sum(xf, axis=(0, 2), keepdims=True)
    sq_ref[...] += jnp.sum(xf * xf, axis=(0, 2), keepdims=True)


def _apply_kernel(scale_ref, shift_ref, x_ref, o_ref, *, lp_apply):
    """T2 pass 2: y = x * scale + shift (scale/shift already folded)."""
    x = x_ref[...]
    scale = scale_ref[...]                           # f32 (1, c_tile, 1)
    shift = shift_ref[...]
    if lp_apply:
        o_ref[...] = (x * scale.astype(x.dtype)
                      + shift.astype(x.dtype)).astype(o_ref.dtype)
    else:
        o_ref[...] = (x.astype(jnp.float32) * scale + shift).astype(o_ref.dtype)


# ---------------------------------------------------------------------------
# Wrapper
# ---------------------------------------------------------------------------

def dsbn_forward(x, domain_label, gamma, beta, *, force_two_pass=False):
    """Forward of DomainSpecificBatchNorm2d (training, within_single_batch).

    x:            (N, C, H, W), N == 4 * STRIDE; any float dtype
    domain_label: (N,) int32 with domain_label[d * STRIDE] == d (checked on
                  the host by the caller, as in the PyTorch module asserts)
    gamma, beta:  (NUM_DOMAINS, C) affine params of each nn.BatchNorm2d
    Returns (out, domain_label), matching the PyTorch module.
    """
    N, C, H, W = x.shape
    assert NUM_DOMAINS * STRIDE == N, "module requires N == 4 * 16"
    HW = H * W

    # Free, contiguous reshapes only — no host transposes.
    x3 = x.reshape(N, C, HW)
    g3 = gamma.reshape(NUM_DOMAINS, C, 1).astype(jnp.float32)
    b3 = beta.reshape(NUM_DOMAINS, C, 1).astype(jnp.float32)

    itemsize = jnp.dtype(x.dtype).itemsize
    lp_apply = bool(jnp.issubdtype(x.dtype, jnp.floating) and itemsize == 2)

    cap = _vmem_capacity_bytes()
    vmem_limit = max(32 * 1024 * 1024, min(int(cap * 0.9), 96 * 1024 * 1024))
    cparams2 = pltpu.CompilerParams(
        dimension_semantics=("parallel", "parallel"),
        vmem_limit_bytes=vmem_limit)

    # ---------------- Path T1: single sweep, full-HW blocks -----------------
    ct1 = None if force_two_pass else _select_t1_c_tile(C, HW, itemsize)
    if ct1 is not None:
        num_ct = C // ct1
        out = pl.pallas_call(
            functools.partial(_bn_block_kernel, lp_apply=lp_apply),
            out_shape=jax.ShapeDtypeStruct((N, C, HW), x.dtype),
            grid_spec=pltpu.PrefetchScalarGridSpec(
                num_scalar_prefetch=0,
                grid=(NUM_DOMAINS, num_ct),
                in_specs=[
                    pl.BlockSpec((STRIDE, ct1, HW), lambda d, c: (d, c, 0)),
                    pl.BlockSpec((1, ct1, 1), lambda d, c: (d, c, 0)),
                    pl.BlockSpec((1, ct1, 1), lambda d, c: (d, c, 0)),
                ],
                out_specs=pl.BlockSpec((STRIDE, ct1, HW),
                                       lambda d, c: (d, c, 0)),
            ),
            compiler_params=cparams2,
        )(x3, g3, b3)
        return out.reshape(N, C, H, W), domain_label

    # ---------------- Path T2: HW tiled, stats pass + apply pass ------------
    ct, ht, HWp = _select_t2_tiles(C, HW, itemsize)
    x3p = x3 if HWp == HW else jnp.pad(x3, ((0, 0), (0, 0), (0, HWp - HW)))
    num_ct = C // ct
    num_hw = HWp // ht

    ssum, ssq = pl.pallas_call(
        _stats_kernel,
        out_shape=(jax.ShapeDtypeStruct((NUM_DOMAINS, C, 1), jnp.float32),
                   jax.ShapeDtypeStruct((NUM_DOMAINS, C, 1), jnp.float32)),
        grid_spec=pltpu.PrefetchScalarGridSpec(
            num_scalar_prefetch=0,
            grid=(NUM_DOMAINS, num_ct, num_hw),
            in_specs=[pl.BlockSpec((STRIDE, ct, ht), lambda d, c, h: (d, c, h))],
            out_specs=(pl.BlockSpec((1, ct, 1), lambda d, c, h: (d, c, 0)),
                       pl.BlockSpec((1, ct, 1), lambda d, c, h: (d, c, 0))),
        ),
        compiler_params=pltpu.CompilerParams(
            dimension_semantics=("parallel", "parallel", "arbitrary"),
            vmem_limit_bytes=vmem_limit),
    )(x3p)

    # Tiny O(D*C) fold of stats + affine into scale/shift — left in XLA.
    cnt = jnp.float32(STRIDE * HW)                    # true count (padding is zeros)
    mean = ssum / cnt
    var = jnp.maximum(ssq / cnt - mean * mean, 0.0)   # single-pass var, clamped
    inv = lax.rsqrt(var + EPS)
    scale = g3 * inv
    shift = b3 - mean * scale

    outp = pl.pallas_call(
        functools.partial(_apply_kernel, lp_apply=lp_apply),
        out_shape=jax.ShapeDtypeStruct((N, C, HWp), x.dtype),
        grid_spec=pltpu.PrefetchScalarGridSpec(
            num_scalar_prefetch=0,
            grid=(NUM_DOMAINS, num_ct, num_hw),
            in_specs=[
                pl.BlockSpec((1, ct, 1), lambda d, c, h: (d, c, 0)),
                pl.BlockSpec((1, ct, 1), lambda d, c, h: (d, c, 0)),
                pl.BlockSpec((STRIDE, ct, ht), lambda d, c, h: (d, c, h)),
            ],
            out_specs=pl.BlockSpec((STRIDE, ct, ht), lambda d, c, h: (d, c, h)),
        ),
        compiler_params=pltpu.CompilerParams(
            dimension_semantics=("parallel", "parallel", "parallel"),
            vmem_limit_bytes=vmem_limit),
    )(scale, shift, x3p)

    out = outp if HWp == HW else outp[:, :, :HW]
    return out.reshape(N, C, H, W), domain_label


# ---------------------------------------------------------------------------
# Pure-JAX reference + self-test
# ---------------------------------------------------------------------------

def _reference(x, gamma, beta):
    """Pure-JAX reference of the same forward (per-domain training BN)."""
    outs = []
    for d in range(NUM_DOMAINS):
        xs = x[d * STRIDE:(d + 1) * STRIDE]
        mean = xs.mean(axis=(0, 2, 3), keepdims=True)
        var = ((xs - mean) ** 2).mean(axis=(0, 2, 3), keepdims=True)
        y = (xs - mean) / jnp.sqrt(var + EPS)
        y = y * gamma[d][None, :, None, None] + beta[d][None, :, None, None]
        outs.append(y)
    return jnp.concatenate(outs, axis=0)


if __name__ == "__main__":
    key = jax.random.PRNGKey(0)
    kx, kg, kb, kx2 = jax.random.split(key, 4)

    N, C, H, W = NUM_DOMAINS * STRIDE, 4, 16, 16   # N = 64 required by module
    x = jax.random.normal(kx, (N, C, H, W), dtype=jnp.float32)
    domain_label = jnp.repeat(jnp.arange(NUM_DOMAINS, dtype=jnp.int32), STRIDE)

    # nn.BatchNorm2d default init is weight=1, bias=0; perturb deterministically
    # so the affine transform is exercised.
    gamma = 1.0 + 0.1 * jax.random.normal(kg, (NUM_DOMAINS, C), dtype=jnp.float32)
    beta = 0.05 * jax.random.normal(kb, (NUM_DOMAINS, C), dtype=jnp.float32)

    # Module-style domain_label checks, done on the host OUTSIDE any jit path.
    for d in range(NUM_DOMAINS):
        assert int(domain_label[d * STRIDE]) == d

    ref = _reference(x, gamma, beta)

    # Path 1: default single-sweep tiled kernel (grid over domains x channel tiles).
    out1, lbl = dsbn_forward(x, domain_label, gamma, beta)
    out1 = jax.block_until_ready(out1)
    assert out1.shape == (N, C, H, W) and out1.dtype == x.dtype
    assert bool(jnp.allclose(out1, ref, atol=1e-4, rtol=1e-4))
    assert bool(jnp.all(lbl == domain_label))

    # Path 2: forced two-pass path (HW-tiled stats pass + apply pass).
    out2, _ = dsbn_forward(x, domain_label, gamma, beta, force_two_pass=True)
    out2 = jax.block_until_ready(out2)
    assert bool(jnp.allclose(out2, ref, atol=1e-4, rtol=1e-4))

    # Path 3: bf16 activations stay bf16 end-to-end (f32 stats, bf16 apply).
    xb = x.astype(jnp.bfloat16)
    out3, _ = dsbn_forward(xb, domain_label, gamma, beta)
    out3 = jax.block_until_ready(out3)
    assert out3.dtype == jnp.bfloat16
    ref_b = _reference(xb.astype(jnp.float32), gamma, beta)
    assert bool(jnp.allclose(out3.astype(jnp.float32), ref_b,
                             atol=3e-2, rtol=3e-2))

    # Path 4: two-pass path with HW not a multiple of 128 (exercises padding).
    H2 = W2 = 7
    x4 = jax.random.normal(kx2, (N, C, H2, W2), dtype=jnp.float32)
    ref4 = _reference(x4, gamma, beta)
    out4, _ = dsbn_forward(x4, domain_label, gamma, beta, force_two_pass=True)
    out4 = jax.block_until_ready(out4)
    assert out4.shape == (N, C, H2, W2)
    assert bool(jnp.allclose(out4, ref4, atol=1e-4, rtol=1e-4))

    print("KERNEL_OK")
</pallas_src>

<mosaic_0001>
module attributes {stable_mosaic.version = 11 : i64} {
  func.func @_bn_block_kernel(%arg0: i32, %arg1: i32, %arg2: memref<16x4x256xf32, #tpu.memory_space<vmem>>, %arg3: memref<1x4x1xf32, #tpu.memory_space<vmem>>, %arg4: memref<1x4x1xf32, #tpu.memory_space<vmem>>, %arg5: memref<16x4x256xf32, #tpu.memory_space<vmem>>) attributes {dimension_semantics = [#tpu.dimension_semantics<parallel>, #tpu.dimension_semantics<parallel>], iteration_bounds = array<i64: 4, 1>, scalar_prefetch = 0 : i64, scratch_operands = 0 : i64, tpu.core_type = #tpu.core_type<tc>, window_params = [{transform_indices = @transform_0, window_bounds = array<i64: 16, 4, 256>}, {transform_indices = @transform_1, window_bounds = array<i64: 1, 4, 1>}, {transform_indices = @transform_2, window_bounds = array<i64: 1, 4, 1>}, {transform_indices = @transform_3, window_bounds = array<i64: 16, 4, 256>}]} {
    %c0 = arith.constant 0 : index
    %c0_0 = arith.constant 0 : index
    %c0_1 = arith.constant 0 : index
    %0 = vector.load %arg2[%c0, %c0_0, %c0_1] : memref<16x4x256xf32, #tpu.memory_space<vmem>>, vector<16x4x256xf32>
    %cst = arith.constant dense<0.000000e+00> : vector<4xf32>
    %1 = vector.multi_reduction <add>, %0, %cst [0, 2] : vector<16x4x256xf32> to vector<4xf32>
    %2 = vector.shape_cast %1 : vector<4xf32> to vector<1x4x1xf32>
    %cst_2 = arith.constant 2.44140625E-4 : f32
    %3 = vector.broadcast %cst_2 : f32 to vector<1x4x1xf32>
    %4 = arith.mulf %2, %3 : vector<1x4x1xf32>
    %5 = vector.broadcast %4 : vector<1x4x1xf32> to vector<16x4x256xf32>
    %6 = arith.subf %0, %5 : vector<16x4x256xf32>
    %7 = arith.mulf %6, %6 : vector<16x4x256xf32>
    %cst_3 = arith.constant dense<0.000000e+00> : vector<4xf32>
    %8 = vector.multi_reduction <add>, %7, %cst_3 [0, 2] : vector<16x4x256xf32> to vector<4xf32>
    %9 = vector.shape_cast %8 : vector<4xf32> to vector<1x4x1xf32>
    %cst_4 = arith.constant 2.44140625E-4 : f32
    %10 = vector.broadcast %cst_4 : f32 to vector<1x4x1xf32>
    %11 = arith.mulf %9, %10 : vector<1x4x1xf32>
    %cst_5 = arith.constant 9.99999971E-10 : f32
    %12 = vector.broadcast %cst_5 : f32 to vector<1x4x1xf32>
    %13 = arith.addf %11, %12 : vector<1x4x1xf32>
    %14 = math.rsqrt %13 : vector<1x4x1xf32>
    %c0_6 = arith.constant 0 : index
    %c0_7 = arith.constant 0 : index
    %c0_8 = arith.constant 0 : index
    %15 = vector.load %arg3[%c0_6, %c0_7, %c0_8] : memref<1x4x1xf32, #tpu.memory_space<vmem>>, vector<1x4x1xf32>
    %16 = arith.mulf %15, %14 : vector<1x4x1xf32>
    %c0_9 = arith.constant 0 : index
    %c0_10 = arith.constant 0 : index
    %c0_11 = arith.constant 0 : index
    %17 = vector.load %arg4[%c0_9, %c0_10, %c0_11] : memref<1x4x1xf32, #tpu.memory_space<vmem>>, vector<1x4x1xf32>
    %18 = arith.mulf %4, %16 : vector<1x4x1xf32>
    %19 = arith.subf %17, %18 : vector<1x4x1xf32>
    %20 = vector.broadcast %16 : vector<1x4x1xf32> to vector<16x4x256xf32>
    %21 = arith.mulf %0, %20 : vector<16x4x256xf32>
    %22 = vector.broadcast %19 : vector<1x4x1xf32> to vector<16x4x256xf32>
    %23 = arith.addf %21, %22 : vector<16x4x256xf32>
    %c0_12 = arith.constant 0 : index
    %c0_13 = arith.constant 0 : index
    %c0_14 = arith.constant 0 : index
    %24 = vector.load %arg5[%c0_12, %c0_13, %c0_14] : memref<16x4x256xf32, #tpu.memory_space<vmem>>, vector<16x4x256xf32>
    tpu.vector_store %arg5[%c0_12, %c0_13, %c0_14], %23 {strides = array<i32>} : memref<16x4x256xf32, #tpu.memory_space<vmem>>, vector<16x4x256xf32>,
    return
  }
  func.func @transform_0(%arg0: i32, %arg1: i32) -> (i32, i32, i32) {
    %c0_i32 = arith.constant 0 : i32
    %c0_i32_0 = arith.constant 0 : i32
    return %arg0, %arg1, %c0_i32 : i32, i32, i32
  }
  func.func @transform_1(%arg0: i32, %arg1: i32) -> (i32, i32, i32) {
    %c0_i32 = arith.constant 0 : i32
    %c0_i32_0 = arith.constant 0 : i32
    return %arg0, %arg1, %c0_i32 : i32, i32, i32
  }
  func.func @transform_2(%arg0: i32, %arg1: i32) -> (i32, i32, i32) {
    %c0_i32 = arith.constant 0 : i32
    %c0_i32_0 = arith.constant 0 : i32
    return %arg0, %arg1, %c0_i32 : i32, i32, i32
  }
  func.func @transform_3(%arg0: i32, %arg1: i32) -> (i32, i32, i32) {
    %c0_i32 = arith.constant 0 : i32
    %c0_i32_0 = arith.constant 0 : i32
    return %arg0, %arg1, %c0_i32 : i32, i32, i32
  }
}

</mosaic_0001>

<llo_original>
// kernel: tpu_custom_call.1
$region0: #{tpu_custom_call.1}
  #allocation0 [shape = 'u32[]', space=smem, size = 0x4, offset = 0x4, fixed_abs, tag = 'smem constant byte address 0x4 - core index']
  #allocation1 [shape = 'u32[144,128]{1,0:T(1,128)}', space=vmem, size = 0x12000, scoped, tag = 'internal scratch']
  %s0 = inlined_call_operand.hbm [shape: f32[64,4,256], index: 0, kind: input, shape index: {}]
  %s1 = inlined_call_operand.vmem [shape: f32[4,4,1], index: 1, kind: input, shape index: {}]
  %s2 = inlined_call_operand.vmem [shape: f32[4,4,1], index: 2, kind: input, shape index: {}]
  %s3 = inlined_call_operand.hbm [shape: f32[64,4,256], index: 3, kind: output, shape index: {}]
  %s4 = sld [smem:[#allocation0]]
  $region49: #{tpu_custom_call.1} parent=0
    _
  %s6 = ssub.s32 1, %s4
  %s7 = scalar_select 0, %s6, %s4
  $region1: #{tpu_custom_call.1} parent=0
    #allocation2 [shape = 'u8[131072]{0}', space=vmem, size = 0x20000, scoped, tag = 'input window, operand 0']
    #allocation3 [shape = 's32[2]{0}', space=sflag, size = 0x8, scoped, tag = 'scoped memory for tpu_custom_call.1']
    #allocation4 [shape = 's32[2]{0}', space=sflag, size = 0x8, scoped, tag = 'scoped memory for tpu_custom_call.1']
    #allocation5 [shape = 'u8[131072]{0}', space=vmem, size = 0x20000, scoped, tag = 'output window, operand 0']
    %8 = vsyncpa [#allocation3], 0
    %s9 = scalar_lea.sflag [#allocation3], 1
    %10 = vsyncpa %s9, 0
    %11 = vsyncpa [#allocation4], 0
    %s12 = scalar_lea.sflag [#allocation4], 1
    %13 = vsyncpa %s12, 0
    loop: start=0, step=1, limit=6
    $region2: #{tpu_custom_call.1} parent=1 // loop_pre_header
      _
    $region3: #{tpu_custom_call.1} parent=1 // loop_header
      %s15 = sphi 0, %s19
      %p16 = scmp.ge.s32.totalorder %s15, 6
      %s22 = sphi 0, %s34
      %s23 = sphi 0, %s30
      %s24 = sphi 0, %s22
      %s25 = sphi 0, %s23
      %s26 = sphi 0, %s24
      %s27 = sphi 0, %s25
      %s39 = sphi 0, %s41
      %s42 = sphi 0, %s39
      %s43 = sphi 0, %s42
      %s59 = sphi 0, %s43
      %s67 = sphi 0, %s69
      %s70 = sphi 0, %s67
      %s71 = sphi 0, %s70
      %s87 = sphi 0, %s71
      %s95 = sphi 0, %s97
      %s98 = sphi 0, %s95
      %s99 = sphi 0, %s98
      %s115 = sphi 0, %s99
      %s123 = sphi 0, %s125
      %s126 = sphi 0, %s123
      %s127 = sphi 0, %s126
      %s143 = sphi 0, %s127
    $region4: #{tpu_custom_call.1} parent=1 // loop_header_branch
      %18 = sbr.rel (%p16) target = $region8
    $region5: #{tpu_custom_call.1} parent=1 // loop_body
      %s20 = ssub.s32 %s15, 1
      %s21 = ssub.s32 %s15, 2
      %s28 = sadd.s32 1, %s23
      %p29 = scmp.ge.s32.totalorder %s28, 1
      %s30 = scalar_select %p29, 0, %s28
      %s31 = sadd.s32 1, %s22
      %s32 = scalar_select %p29, %s31, %s22
      %p33 = scmp.ge.s32.totalorder %s32, 4
      %s34 = scalar_select %p33, 0, %s32
      %s35 = ssub.s32 %s22, %s34
      %s36 = ssub.s32 %s23, %s30
      %s37 = sor.u32 %s35, %s36
      %p38 = scmp.eq.s32.totalorder %s37, 0
      %s40 = sadd.s32 %s39, 1
      %s41 = scalar_select %p38, %s39, %s40
      %p44 = pneg %p38
      %p45 = scmp.eq.s32.totalorder %s15, 3
      %p46 = por %p44, %p45
      %p47 = scmp.ne.s32.totalorder %s39, %s42
      %p48 = scmp.eq.s32.totalorder %s15, 0
      %p49 = por %p47, %p48
      %p50 = scmp.ne.s32.totalorder %s39, %s42
      %p51 = scmp.eq.s32.totalorder %s20, 3
      %p52 = por %p50, %p51
      %p53 = scmp.ne.s32.totalorder %s42, %s43
      %p54 = scmp.eq.s32.totalorder %s20, 0
      %p55 = por %p53, %p54
      %p56 = scmp.ne.s32.totalorder %s42, %s43
      %p57 = scmp.eq.s32.totalorder %s21, 3
      %p58 = por %p56, %p57
      %p60 = scmp.ne.s32.totalorder %s43, %s59
      %p61 = scmp.eq.s32.totalorder %s21, 0
      %p62 = por %p60, %p61
      %s63 = ssub.s32 %s22, %s34
      %s64 = ssub.s32 %s23, %s30
      %s65 = sor.u32 %s63, %s64
      %p66 = scmp.eq.s32.totalorder %s65, 0
      %s68 = sadd.s32 %s67, 1
      %s69 = scalar_select %p66, %s67, %s68
      %p72 = pneg %p66
      %p73 = scmp.eq.s32.totalorder %s15, 3
      %p74 = por %p72, %p73
      %p75 = scmp.ne.s32.totalorder %s67, %s70
      %p76 = scmp.eq.s32.totalorder %s15, 0
      %p77 = por %p75, %p76
      %p78 = scmp.ne.s32.totalorder %s67, %s70
      %p79 = scmp.eq.s32.totalorder %s20, 3
      %p80 = por %p78, %p79
      %p81 = scmp.ne.s32.totalorder %s70, %s71
      %p82 = scmp.eq.s32.totalorder %s20, 0
      %p83 = por %p81, %p82
      %p84 = scmp.ne.s32.totalorder %s70, %s71
      %p85 = scmp.eq.s32.totalorder %s21, 3
      %p86 = por %p84, %p85
      %p88 = scmp.ne.s32.totalorder %s71, %s87
      %p89 = scmp.eq.s32.totalorder %s21, 0
      %p90 = por %p88, %p89
      %s91 = ssub.s32 %s22, %s34
      %s92 = ssub.s32 %s23, %s30
      %s93 = sor.u32 %s91, %s92
      %p94 = scmp.eq.s32.totalorder %s93, 0
      %s96 = sadd.s32 %s95, 1
      %s97 = scalar_select %p94, %s95, %s96
      %p100 = pneg %p94
      %p101 = scmp.eq.s32.totalorder %s15, 3
      %p102 = por %p100, %p101
      %p103 = scmp.ne.s32.totalorder %s95, %s98
      %p104 = scmp.eq.s32.totalorder %s15, 0
      %p105 = por %p103, %p104
      %p106 = scmp.ne.s32.totalorder %s95, %s98
      %p107 = scmp.eq.s32.totalorder %s20, 3
      %p108 = por %p106, %p107
      %p109 = scmp.ne.s32.totalorder %s98, %s99
      %p110 = scmp.eq.s32.totalorder %s20, 0
      %p111 = por %p109, %p110
      %p112 = scmp.ne.s32.totalorder %s98, %s99
      %p113 = scmp.eq.s32.totalorder %s21, 3
      %p114 = por %p112, %p113
      %p116 = scmp.ne.s32.totalorder %s99, %s115
      %p117 = scmp.eq.s32.totalorder %s21, 0
      %p118 = por %p116, %p117
      %s119 = ssub.s32 %s22, %s34
      %s120 = ssub.s32 %s23, %s30
      %s121 = sor.u32 %s119, %s120
      %p122 = scmp.eq.s32.totalorder %s121, 0
      %s124 = sadd.s32 %s123, 1
      %s125 = scalar_select %p122, %s123, %s124
      %p128 = pneg %p122
      %p129 = scmp.eq.s32.totalorder %s15, 3
      %p130 = por %p128, %p129
      %p131 = scmp.ne.s32.totalorder %s123, %s126
      %p132 = scmp.eq.s32.totalorder %s15, 0
      %p133 = por %p131, %p132
      %p134 = scmp.ne.s32.totalorder %s123, %s126
      %p135 = scmp.eq.s32.totalorder %s20, 3
      %p136 = por %p134, %p135
      %p137 = scmp.ne.s32.totalorder %s126, %s127
      %p138 = scmp.eq.s32.totalorder %s20, 0
      %p139 = por %p137, %p138
      %p140 = scmp.ne.s32.totalorder %s126, %s127
      %p141 = scmp.eq.s32.totalorder %s21, 3
      %p142 = por %p140, %p141
      %p144 = scmp.ne.s32.totalorder %s127, %s143
      %p145 = scmp.eq.s32.totalorder %s21, 0
      %p146 = por %p144, %p145
      %p147 = scmp.le.s32.totalorder 1, %s15
      %p148 = scmp.lt.s32.totalorder %s15, 5
      %p149 = pnand %p147, %p148
      %p150 = pneg %p149
      // Predicated region
      $region9: #{tpu_custom_call.1} parent=5 // pred_check
        _
      $region10: #{tpu_custom_call.1} parent=5 // pred_check_branch
        %152 = sbr.rel (%p149) target = $region12
      $region11: #{tpu_custom_call.1} parent=5 // pred_region
        %s153 = ssub.s32 %s15, 1
      $region12: #{tpu_custom_call.1} parent=5 // pred_fallthru
        _
      %p154 = scmp.lt.s32.totalorder %s15, 4
      // Predicated region
      $region13: #{tpu_custom_call.1} parent=5 // pred_check
        %p155 = pneg %p154
      $region14: #{tpu_custom_call.1} parent=5 // pred_check_branch
        %157 = sbr.rel (%p155) target = $region16
      $region15: #{tpu_custom_call.1} parent=5 // pred_region
        // Predicated region
        $region17: #{tpu_custom_call.1} parent=15 // pred_check
          %p158 = pneg %p49
        $region18: #{tpu_custom_call.1} parent=15 // pred_check_branch
          %160 = sbr.rel (%p158) target = $region20
        $region19: #{tpu_custom_call.1} parent=15 // pred_region
          %s161 = sand.u32 %s39, 1
          %s162 = scalar_lea.sflag [#allocation3], %s161
          %s163 = sand.u32 %s39, 1
          %s164 = smul.addr %s163, 128
          %s165 = scalar_lea.vmem [#allocation2], %s164
          %s166 = smul.u32 16, %s22
          %s168 = ssub.s32 2048, 2048
          %169 = vsyncadd %s162, %s168
          %s170 = smul.addr %s23, 2
          %s171 = smul.addr %s166, 2
          %s172 = sadd.s32 %s170, %s171
          %s173 = smul.addr %s172, 64
          %s174 = scalar_lea.hbm %s0, %s173
          %s175 = sshll.u32 %s165, 4
          %s176 = int_to_ptr.vmem [resolvable:$true] %s175
          %181 = dma.hbm_to_vmem [thread:$0]  %s174, 2048, %s176, %s162, 128, 128, 8
        $region20: #{tpu_custom_call.1} parent=15 // pred_fallthru
          _
        // Predicated region
        $region21: #{tpu_custom_call.1} parent=15 // pred_check
          %p182 = pneg %p77
        $region22: #{tpu_custom_call.1} parent=15 // pred_check_branch
          %184 = sbr.rel (%p182) target = $region24
        $region23: #{tpu_custom_call.1} parent=15 // pred_region
          %p185 = scmp.lt.s32.totalorder %s22, 3
          %s186 = scalar_select %p185, %s22, 3
          %p187 = scmp.lt.s32.totalorder %s23, 0
          %s188 = scalar_select %p187, %s23, 0
          %s189 = sadd.s32 %s188, %s186
          %s190 = smul.addr %s189, 4
          %s191 = scalar_lea.vmem %s1, %s190
        $region24: #{tpu_custom_call.1} parent=15 // pred_fallthru
          _
        // Predicated region
        $region25: #{tpu_custom_call.1} parent=15 // pred_check
          %p192 = pneg %p105
        $region26: #{tpu_custom_call.1} parent=15 // pred_check_branch
          %194 = sbr.rel (%p192) target = $region28
        $region27: #{tpu_custom_call.1} parent=15 // pred_region
          %p195 = scmp.lt.s32.totalorder %s22, 3
          %s196 = scalar_select %p195, %s22, 3
          %p197 = scmp.lt.s32.totalorder %s23, 0
          %s198 = scalar_select %p197, %s23, 0
          %s199 = sadd.s32 %s198, %s196
          %s200 = smul.addr %s199, 4
          %s201 = scalar_lea.vmem %s2, %s200
        $region28: #{tpu_custom_call.1} parent=15 // pred_fallthru
          _
      $region16: #{tpu_custom_call.1} parent=5 // pred_fallthru
        _
      %p202 = scmp.le.s32.totalorder 1, %s15
      %p203 = scmp.lt.s32.totalorder %s15, 5
      %p204 = pnand %p202, %p203
      %p205 = pneg %p204
      // Predicated region
      $region29: #{tpu_custom_call.1} parent=5 // pred_check
        _
      $region30: #{tpu_custom_call.1} parent=5 // pred_check_branch
        %207 = sbr.rel (%p204) target = $region32
      $region31: #{tpu_custom_call.1} parent=5 // pred_region
        %s208 = ssub.s32 %s15, 1
        %s209 = sand.u32 %s42, 1
        %s210 = scalar_lea.sflag [#allocation3], %s209
        %s211 = sand.u32 %s42, 1
        %s212 = smul.addr %s211, 128
        %s213 = scalar_lea.vmem [#allocation2], %s212
        // Predicated region
        $region33: #{tpu_custom_call.1} parent=31 // pred_check
          %p214 = pneg %p55
        $region34: #{tpu_custom_call.1} parent=31 // pred_check_branch
          %216 = sbr.rel (%p214) target = $region36
        $region35: #{tpu_custom_call.1} parent=31 // pred_region
          %217 = dma.done %s210, 2048
        $region36: #{tpu_custom_call.1} parent=31 // pred_fallthru
          _
        %s218 = sand.u32 %s42, 1
        %s219 = scalar_lea.sflag [#allocation3], %s218
        %s220 = sand.u32 %s42, 1
        %s221 = smul.addr %s220, 128
        %s222 = scalar_lea.vmem [#allocation2], %s221
        %p223 = pneg %p55
        %p224 = pneg %p52
        %p225 = scmp.lt.s32.totalorder %s24, 3
        %s226 = scalar_select %p225, %s24, 3
        %p227 = scmp.lt.s32.totalorder %s25, 0
        %s228 = scalar_select %p227, %s25, 0
        %s229 = sadd.s32 %s228, %s226
        %s230 = smul.addr %s229, 4
        %s231 = scalar_lea.vmem %s1, %s230
        %p232 = pneg %p83
        %p233 = pneg %p80
        %p234 = scmp.lt.s32.totalorder %s24, 3
        %s235 = scalar_select %p234, %s24, 3
        %p236 = scmp.lt.s32.totalorder %s25, 0
        %s237 = scalar_select %p236, %s25, 0
        %s238 = sadd.s32 %s237, %s235
        %s239 = smul.addr %s238, 4
        %s240 = scalar_lea.vmem %s2, %s239
        %p241 = pneg %p111
        %p242 = pneg %p108
        %p243 = pneg %p139
        %p244 = pneg %p136
        %s245 = sand.u32 %s126, 1
        %s246 = scalar_lea.sflag [#allocation4], %s245
        %s247 = sand.u32 %s126, 1
        %s248 = smul.addr %s247, 128
        %s249 = scalar_lea.vmem [#allocation5], %s248
        %s250 = smul.u32 16, %s24
        %p251 = scmp.lt.s32.totalorder %s24, 3
        %s252 = scalar_select %p251, %s24, 3
        %p253 = scmp.lt.s32.totalorder %s25, 0
        %s254 = scalar_select %p253, %s25, 0
        %s255 = sadd.s32 %s254, %s252
        %s256 = smul.addr %s255, 4
        %s257 = scalar_lea.vmem %s1, %s256
        %p258 = scmp.lt.s32.totalorder %s24, 3
        %s259 = scalar_select %p258, %s24, 3
        %p260 = scmp.lt.s32.totalorder %s25, 0
        %s261 = scalar_select %p260, %s25, 0
        %s262 = sadd.s32 %s261, %s259
        %s263 = smul.addr %s262, 4
        %s264 = scalar_lea.vmem %s2, %s263
        %s265 = smul.u32 16, %s24
        %v266 = vld [vmem:[%s213] sm:$0xff]
        %v267 = vld [vmem:[%s213 + $0x8] sm:$0xff]
        %v268 = vld [vmem:[%s213 + $0x10] sm:$0xff]
        %v269 = vld [vmem:[%s213 + $0x18] sm:$0xff]
        %v270 = vld [vmem:[%s213 + $0x20] sm:$0xff]
        %v271 = vld [vmem:[%s213 + $0x28] sm:$0xff]
        %v272 = vld [vmem:[%s213 + $0x30] sm:$0xff]
        %v273 = vld [vmem:[%s213 + $0x38] sm:$0xff]
        %v274 = vld [vmem:[%s213 + $0x40] sm:$0xff]
        %v275 = vld [vmem:[%s213 + $0x48] sm:$0xff]
        %v276 = vld [vmem:[%s213 + $0x50] sm:$0xff]
        %v277 = vld [vmem:[%s213 + $0x58] sm:$0xff]
        %v278 = vld [vmem:[%s213 + $0x60] sm:$0xff]
        %v279 = vld [vmem:[%s213 + $0x68] sm:$0xff]
        %v280 = vld [vmem:[%s213 + $0x70] sm:$0xff]
        %v281 = vld [vmem:[%s213 + $0x78] sm:$0xff]
        %v298 = vcombine.high %v266, %v266
        %v299 = vcombine.high %v267, %v267
        %v300 = vcombine.high %v268, %v268
        %v301 = vcombine.high %v269, %v269
        %v302 = vcombine.high %v270, %v270
        %v303 = vcombine.high %v271, %v271
        %v304 = vcombine.high %v272, %v272
        %v305 = vcombine.high %v273, %v273
        %v306 = vcombine.high %v274, %v274
        %v307 = vcombine.high %v275, %v275
        %v308 = vcombine.high %v276, %v276
        %v309 = vcombine.high %v277, %v277
        %v310 = vcombine.high %v278, %v278
        %v311 = vcombine.high %v279, %v279
        %v312 = vcombine.high %v280, %v280
        %v313 = vcombine.high %v281, %v281
        %vm330 = vcmask 1043456
        %v331 = vsel %vm330, %v266, 0.0
        %v332 = vsel %vm330, %v298, 0.0
        %v333 = vadd.f32 %v331, %v332
        %v334 = vsel %vm330, %v267, 0.0
        %v335 = vadd.f32 %v333, %v334
        %v336 = vsel %vm330, %v299, 0.0
        %v337 = vadd.f32 %v335, %v336
        %v338 = vsel %vm330, %v268, 0.0
        %v339 = vadd.f32 %v337, %v338
        %v340 = vsel %vm330, %v300, 0.0
        %v341 = vadd.f32 %v339, %v340
        %v342 = vsel %vm330, %v269, 0.0
        %v343 = vadd.f32 %v341, %v342
        %v344 = vsel %vm330, %v301, 0.0
        %v345 = vadd.f32 %v343, %v344
        %v346 = vsel %vm330, %v270, 0.0
        %v347 = vadd.f32 %v345, %v346
        %v348 = vsel %vm330, %v302, 0.0
        %v349 = vadd.f32 %v347, %v348
        %v350 = vsel %vm330, %v271, 0.0
        %v351 = vadd.f32 %v349, %v350
        %v352 = vsel %vm330, %v303, 0.0
        %v353 = vadd.f32 %v351, %v352
        %v354 = vsel %vm330, %v272, 0.0
        %v355 = vadd.f32 %v353, %v354
        %v356 = vsel %vm330, %v304, 0.0
        %v357 = vadd.f32 %v355, %v356
        %v358 = vsel %vm330, %v273, 0.0
        %v359 = vadd.f32 %v357, %v358
        %v360 = vsel %vm330, %v305, 0.0
        %v361 = vadd.f32 %v359, %v360
        %v362 = vsel %vm330, %v274, 0.0
        %v363 = vadd.f32 %v361, %v362
        %v364 = vsel %vm330, %v306, 0.0
        %v365 = vadd.f32 %v363, %v364
        %v366 = vsel %vm330, %v275, 0.0
        %v367 = vadd.f32 %v365, %v366
        %v368 = vsel %vm330, %v307, 0.0
        %v369 = vadd.f32 %v367, %v368
        %v370 = vsel %vm330, %v276, 0.0
        %v371 = vadd.f32 %v369, %v370
        %v372 = vsel %vm330, %v308, 0.0
        %v373 = vadd.f32 %v371, %v372
        %v374 = vsel %vm330, %v277, 0.0
        %v375 = vadd.f32 %v373, %v374
        %v376 = vsel %vm330, %v309, 0.0
        %v377 = vadd.f32 %v375, %v376
        %v378 = vsel %vm330, %v278, 0.0
        %v379 = vadd.f32 %v377, %v378
        %v380 = vsel %vm330, %v310, 0.0
        %v381 = vadd.f32 %v379, %v380
        %v382 = vsel %vm330, %v279, 0.0
        %v383 = vadd.f32 %v381, %v382
        %v384 = vsel %vm330, %v311, 0.0
        %v385 = vadd.f32 %v383, %v384
        %v386 = vsel %vm330, %v280, 0.0
        %v387 = vadd.f32 %v385, %v386
        %v388 = vsel %vm330, %v312, 0.0
        %v389 = vadd.f32 %v387, %v388
        %v390 = vsel %vm330, %v281, 0.0
        %v391 = vadd.f32 %v389, %v390
        %v392 = vsel %vm330, %v313, 0.0
        %v393 = vadd.f32 %v391, %v392
        %394 = vadd.xlane.f32.xlu0 %v393
        %v395 = vpop.xlane.xlu0 %394
        %v396 = vmul.f32 %v395, 0.00024414063
        %v399 = vunpack.c.l.s4 839922192
        %v400 = vunpack.c.0.s8 %v399
        %v401 = vlaneseq
        %v402 = vshrl.u32 %v401, 7
        %v403 = vsub.s32 %v400, %v402
        %v404 = vrot.slane %v396, %v403
        %v406 = vsub.f32 %v266, %v404
        %v407 = vsub.f32 %v267, %v404
        %v408 = vsub.f32 %v268, %v404
        %v409 = vsub.f32 %v269, %v404
        %v410 = vsub.f32 %v270, %v404
        %v411 = vsub.f32 %v271, %v404
        %v412 = vsub.f32 %v272, %v404
        %v413 = vsub.f32 %v273, %v404
        %v414 = vsub.f32 %v274, %v404
        %v415 = vsub.f32 %v275, %v404
        %v416 = vsub.f32 %v276, %v404
        %v417 = vsub.f32 %v277, %v404
        %v418 = vsub.f32 %v278, %v404
        %v419 = vsub.f32 %v279, %v404
        %v420 = vsub.f32 %v280, %v404
        %v421 = vsub.f32 %v281, %v404
        %v422 = vmul.f32 %v406, %v406
        %v423 = vmul.f32 %v407, %v407
        %v424 = vmul.f32 %v408, %v408
        %v425 = vmul.f32 %v409, %v409
        %v426 = vmul.f32 %v410, %v410
        %v427 = vmul.f32 %v411, %v411
        %v428 = vmul.f32 %v412, %v412
        %v429 = vmul.f32 %v413, %v413
        %v430 = vmul.f32 %v414, %v414
        %v431 = vmul.f32 %v415, %v415
        %v432 = vmul.f32 %v416, %v416
        %v433 = vmul.f32 %v417, %v417
        %v434 = vmul.f32 %v418, %v418
        %v435 = vmul.f32 %v419, %v419
        %v436 = vmul.f32 %v420, %v420
        %v437 = vmul.f32 %v421, %v421
        %v454 = vcombine.high %v422, %v422
        %v455 = vcombine.high %v423, %v423
        %v456 = vcombine.high %v424, %v424
        %v457 = vcombine.high %v425, %v425
        %v458 = vcombine.high %v426, %v426
        %v459 = vcombine.high %v427, %v427
        %v460 = vcombine.high %v428, %v428
        %v461 = vcombine.high %v429, %v429
        %v462 = vcombine.high %v430, %v430
        %v463 = vcombine.high %v431, %v431
        %v464 = vcombine.high %v432, %v432
        %v465 = vcombine.high %v433, %v433
        %v466 = vcombine.high %v434, %v434
        %v467 = vcombine.high %v435, %v435
        %v468 = vcombine.high %v436, %v436
        %v469 = vcombine.high %v437, %v437
        %v486 = vsel %vm330, %v422, 0.0
        %v487 = vsel %vm330, %v454, 0.0
        %v488 = vadd.f32 %v486, %v487
        %v489 = vsel %vm330, %v423, 0.0
        %v490 = vadd.f32 %v488, %v489
        %v491 = vsel %vm330, %v455, 0.0
        %v492 = vadd.f32 %v490, %v491
        %v493 = vsel %vm330, %v424, 0.0
        %v494 = vadd.f32 %v492, %v493
        %v495 = vsel %vm330, %v456, 0.0
        %v496 = vadd.f32 %v494, %v495
        %v497 = vsel %vm330, %v425, 0.0
        %v498 = vadd.f32 %v496, %v497
        %v499 = vsel %vm330, %v457, 0.0
        %v500 = vadd.f32 %v498, %v499
        %v501 = vsel %vm330, %v426, 0.0
        %v502 = vadd.f32 %v500, %v501
        %v503 = vsel %vm330, %v458, 0.0
        %v504 = vadd.f32 %v502, %v503
        %v505 = vsel %vm330, %v427, 0.0
        %v506 = vadd.f32 %v504, %v505
        %v507 = vsel %vm330, %v459, 0.0
        %v508 = vadd.f32 %v506, %v507
        %v509 = vsel %vm330, %v428, 0.0
        %v510 = vadd.f32 %v508, %v509
        %v511 = vsel %vm330, %v460, 0.0
        %v512 = vadd.f32 %v510, %v511
        %v513 = vsel %vm330, %v429, 0.0
        %v514 = vadd.f32 %v512, %v513
        %v515 = vsel %vm330, %v461, 0.0
        %v516 = vadd.f32 %v514, %v515
        %v517 = vsel %vm330, %v430, 0.0
        %v518 = vadd.f32 %v516, %v517
        %v519 = vsel %vm330, %v462, 0.0
        %v520 = vadd.f32 %v518, %v519
        %v521 = vsel %vm330, %v431, 0.0
        %v522 = vadd.f32 %v520, %v521
        %v523 = vsel %vm330, %v463, 0.0
        %v524 = vadd.f32 %v522, %v523
        %v525 = vsel %vm330, %v432, 0.0
        %v526 = vadd.f32 %v524, %v525
        %v527 = vsel %vm330, %v464, 0.0
        %v528 = vadd.f32 %v526, %v527
        %v529 = vsel %vm330, %v433, 0.0
        %v530 = vadd.f32 %v528, %v529
        %v531 = vsel %vm330, %v465, 0.0
        %v532 = vadd.f32 %v530, %v531
        %v533 = vsel %vm330, %v434, 0.0
        %v534 = vadd.f32 %v532, %v533
        %v535 = vsel %vm330, %v466, 0.0
        %v536 = vadd.f32 %v534, %v535
        %v537 = vsel %vm330, %v435, 0.0
        %v538 = vadd.f32 %v536, %v537
        %v539 = vsel %vm330, %v467, 0.0
        %v540 = vadd.f32 %v538, %v539
        %v541 = vsel %vm330, %v436, 0.0
        %v542 = vadd.f32 %v540, %v541
        %v543 = vsel %vm330, %v468, 0.0
        %v544 = vadd.f32 %v542, %v543
        %v545 = vsel %vm330, %v437, 0.0
        %v546 = vadd.f32 %v544, %v545
        %v547 = vsel %vm330, %v469, 0.0
        %v548 = vadd.f32 %v546, %v547
        %549 = vadd.xlane.f32.xlu0 %v548
        %v550 = vpop.xlane.xlu0 %549
        %v551 = vmul.f32 %v550, 0.00024414063
        %v552 = vadd.f32 %v551, 1e-09
        %v553 = vrsqrt.pop %v552
        %v554 = vld [vmem:[%s257] sm:$0xf]
        %v555 = vmul.f32 %v554, %v553
        %v556 = vld [vmem:[%s264] sm:$0xf]
        %v557 = vmul.f32 %v396, %v555
        %v558 = vsub.f32 %v556, %v557
        %560 = vset.pattern.permute.xlu0 0
        %561 = vperm.xlu0 %560, %v555
        %v562 = vpop.permute.xlu0 %561
        %v564 = vunpack.c.l.s4 839922192
        %v565 = vunpack.c.0.s8 %v564
        %v566 = vlaneseq
        %v567 = vshrl.u32 %v566, 7
        %v568 = vsub.s32 %v565, %v567
        %v569 = vrot.slane %v562, %v568
        %v571 = vmul.f32 %v266, %v569
        %v572 = vmul.f32 %v267, %v569
        %v573 = vmul.f32 %v268, %v569
        %v574 = vmul.f32 %v269, %v569
        %v575 = vmul.f32 %v270, %v569
        %v576 = vmul.f32 %v271, %v569
        %v577 = vmul.f32 %v272, %v569
        %v578 = vmul.f32 %v273, %v569
        %v579 = vmul.f32 %v274, %v569
        %v580 = vmul.f32 %v275, %v569
        %v581 = vmul.f32 %v276, %v569
        %v582 = vmul.f32 %v277, %v569
        %v583 = vmul.f32 %v278, %v569
        %v584 = vmul.f32 %v279, %v569
        %v585 = vmul.f32 %v280, %v569
        %v586 = vmul.f32 %v281, %v569
        %588 = vset.pattern.permute.xlu0 0
        %589 = vperm.xlu0 %588, %v558
        %v590 = vpop.permute.xlu0 %589
        %v592 = vunpack.c.l.s4 839922192
        %v593 = vunpack.c.0.s8 %v592
        %v594 = vlaneseq
        %v595 = vshrl.u32 %v594, 7
        %v596 = vsub.s32 %v593, %v595
        %v597 = vrot.slane %v590, %v596
        %v599 = vadd.f32 %v571, %v597
        %v600 = vadd.f32 %v572, %v597
        %v601 = vadd.f32 %v573, %v597
        %v602 = vadd.f32 %v574, %v597
        %v603 = vadd.f32 %v575, %v597
        %v604 = vadd.f32 %v576, %v597
        %v605 = vadd.f32 %v577, %v597
        %v606 = vadd.f32 %v578, %v597
        %v607 = vadd.f32 %v579, %v597
        %v608 = vadd.f32 %v580, %v597
        %v609 = vadd.f32 %v581, %v597
        %v610 = vadd.f32 %v582, %v597
        %v611 = vadd.f32 %v583, %v597
        %v612 = vadd.f32 %v584, %v597
        %v613 = vadd.f32 %v585, %v597
        %v614 = vadd.f32 %v586, %v597
        %615 = vst [vmem:[%s249] sm:$0xff] %v599
        %616 = vst [vmem:[%s249 + $0x8] sm:$0xff] %v600
        %617 = vst [vmem:[%s249 + $0x10] sm:$0xff] %v601
        %618 = vst [vmem:[%s249 + $0x18] sm:$0xff] %v602
        %619 = vst [vmem:[%s249 + $0x20] sm:$0xff] %v603
        %620 = vst [vmem:[%s249 + $0x28] sm:$0xff] %v604
        %621 = vst [vmem:[%s249 + $0x30] sm:$0xff] %v605
        %622 = vst [vmem:[%s249 + $0x38] sm:$0xff] %v606
        %623 = vst [vmem:[%s249 + $0x40] sm:$0xff] %v607
        %624 = vst [vmem:[%s249 + $0x48] sm:$0xff] %v608
        %625 = vst [vmem:[%s249 + $0x50] sm:$0xff] %v609
        %626 = vst [vmem:[%s249 + $0x58] sm:$0xff] %v610
        %627 = vst [vmem:[%s249 + $0x60] sm:$0xff] %v611
        %628 = vst [vmem:[%s249 + $0x68] sm:$0xff] %v612
        %629 = vst [vmem:[%s249 + $0x70] sm:$0xff] %v613
        %630 = vst [vmem:[%s249 + $0x78] sm:$0xff] %v614
        %s631 = sand.u32 %s126, 1
        %s632 = scalar_lea.sflag [#allocation4], %s631
        %s633 = sand.u32 %s126, 1
        %s634 = smul.addr %s633, 128
        %s635 = scalar_lea.vmem [#allocation5], %s634
        // Predicated region
        $region37: #{tpu_custom_call.1} parent=31 // pred_check
          %p636 = pneg %p136
        $region38: #{tpu_custom_call.1} parent=31 // pred_check_branch
          %638 = sbr.rel (%p636) target = $region40
        $region39: #{tpu_custom_call.1} parent=31 // pred_region
          %s639 = smul.u32 16, %s24
          %s641 = ssub.s32 2048, 2048
          %642 = vsyncadd %s632, %s641
          %s643 = smul.addr %s25, 2
          %s644 = smul.addr %s639, 2
          %s645 = sadd.s32 %s643, %s644
          %s646 = smul.addr %s645, 64
          %s647 = scalar_lea.hbm %s3, %s646
          %s648 = sshll.u32 %s635, 4
          %s649 = int_to_ptr.vmem [resolvable:$true] %s648
          %654 = dma.vmem_to_hbm [thread:$0]  %s649, 2048, %s647, %s632, 128, 128, 8
        $region40: #{tpu_custom_call.1} parent=31 // pred_fallthru
          _
      $region32: #{tpu_custom_call.1} parent=5 // pred_fallthru
        _
      %p655 = scmp.le.s32.totalorder 2, %s15
      // Predicated region
      $region41: #{tpu_custom_call.1} parent=5 // pred_check
        %p656 = pneg %p655
      $region42: #{tpu_custom_call.1} parent=5 // pred_check_branch
        %658 = sbr.rel (%p656) target = $region44
      $region43: #{tpu_custom_call.1} parent=5 // pred_region
        %s659 = ssub.s32 %s15, 2
        // Predicated region
        $region45: #{tpu_custom_call.1} parent=43 // pred_check
          %p660 = pneg %p142
        $region46: #{tpu_custom_call.1} parent=43 // pred_check_branch
          %662 = sbr.rel (%p660) target = $region48
        $region47: #{tpu_custom_call.1} parent=43 // pred_region
          %s663 = sand.u32 %s127, 1
          %s664 = scalar_lea.sflag [#allocation4], %s663
          %s665 = sand.u32 %s127, 1
          %s666 = smul.addr %s665, 128
          %s667 = scalar_lea.vmem [#allocation5], %s666
          %668 = dma.done %s664, 2048
        $region48: #{tpu_custom_call.1} parent=43 // pred_fallthru
          _
      $region44: #{tpu_custom_call.1} parent=5 // pred_fallthru
        _
    $region6: #{tpu_custom_call.1} parent=1 // loop_footer
      %s19 = sadd.s32 1, %s15
    $region7: #{tpu_custom_call.1} parent=1 // loop_footer_branch
      %14 = sbr.rel target = $region3
    $region8: #{tpu_custom_call.1} parent=1 // loop_exit
      _
    %669 = vsyncpa [#allocation3], 1
    %s670 = scalar_lea.sflag [#allocation3], 1
    %671 = vsyncpa %s670, 1
    %672 = vsyncpa [#allocation4], 1
    %s673 = scalar_lea.sflag [#allocation4], 1
    %674 = vsyncpa %s673, 1

</llo_original>
